<compile_context>
chip_gen: v6e
topology: v6e:2x2x1
jax: 0.10.0
libtpu: 0.0.40
codegen_flags: <defaults>
</compile_context>

<pallas_src>
import functools

import jax
import jax.numpy as jnp
from jax.experimental import pallas as pl
from jax.experimental.pallas import tpu as pltpu


def _round_up(x, m):
    return ((x + m - 1) // m) * m


def _cdiv(a, b):
    return (a + b - 1) // b


def _mix32(x):
    """lowbias32-style avalanche mix on uint32 values."""
    x = (x ^ (x >> 16)) * jnp.uint32(0x7FEB352D)
    x = (x ^ (x >> 15)) * jnp.uint32(0x846CA68B)
    x = x ^ (x >> 16)
    return x


def _plain_kernel(seed_ref, c_ref, out_ref):
    """mask=False path: plain one-hot, no PRNG work at all."""
    del seed_ref
    tb, tc = out_ref.shape
    j = pl.program_id(1)
    lane = jax.lax.broadcasted_iota(jnp.int32, (tb, tc), 1) + j * tc
    out_ref[...] = (lane == c_ref[...]).astype(out_ref.dtype)


def _masked_kernel(seed_ref, c_ref, out_ref, *, threshold31, batch_tile):
    """mask=True path: one-hot * per-row Bernoulli(prob)."""
    tb, tc = out_ref.shape
    j = pl.program_id(1)
    lane = jax.lax.broadcasted_iota(jnp.int32, (tb, tc), 1) + j * tc
    onehot_f = (lane == c_ref[...]).astype(jnp.float32)              # (tb, tc)

    # Per-row Bernoulli draw: counter-based hash keyed on (seed, global_row).
    # Global row index -> every grid block / TensorCore gets an independent,
    # reproducible stream without any cross-block state.
    i = pl.program_id(0)
    row = jax.lax.broadcasted_iota(jnp.int32, (tb, 1), 0) + i * batch_tile
    s = _mix32(
        (seed_ref[0] + jnp.int32(1)).astype(jnp.uint32) * jnp.uint32(0x9E3779B9)
    )
    x = _mix32(row.astype(jnp.uint32))     # mix the row counter first ...
    x = _mix32(x ^ s)                      # ... then fold in the seed and re-mix
    # Integer-domain Bernoulli test on the top 31 bits (signed compare);
    # threshold = round(prob * 2^31) capped at 2^31-1 -> bias <= ~5e-10.
    keep_f = ((x >> 1).astype(jnp.int32) < jnp.int32(threshold31)).astype(
        jnp.float32
    )                                                                # (tb, 1)

    out_ref[...] = (onehot_f * keep_f).astype(out_ref.dtype)


def class_embedding_block(c, num_classes, prob=0.9, mask=True, seed=0,
                          out_dtype=jnp.float32):
    """JAX/Pallas equivalent of ClassEmbeddingBlock.forward.

    c: int array of shape (B,) with class indices in [0, num_classes).
    Returns `out_dtype` array of shape (B, num_classes) (float32 by default,
    matching the PyTorch module; pass bfloat16 to halve HBM-write traffic if
    the consumer tolerates it — the 0/1 values are exact in bf16).
    NOTE: thread a fresh `seed` per training step, otherwise masks repeat.
    """
    B = int(c.shape[0])
    num_classes = int(num_classes)
    elem = jnp.dtype(out_dtype).itemsize

    # ---------------- tiling ----------------
    # A VMEM row occupies the lane-padded width regardless of num_classes.
    lane_w = _round_up(max(num_classes, 1), 128)
    # ~6 MiB per output block: double-buffered = 12 MiB, which fits even v5e's
    # 16 MiB scoped-VMEM default (v6e/v7x default is 32 MiB), while being large
    # enough (>= 1-2 MiB whenever the problem is) to amortize grid-step
    # overhead and keep HBM writebacks long and contiguous.
    MAX_BLOCK_BYTES = 6 * 1024 * 1024

    if 8 * lane_w * elem <= MAX_BLOCK_BYTES:
        # Full-row tiles: TC spans the whole (unpadded) class axis, so each
        # block writes back one contiguous slab and c is fetched once per
        # row-tile.  Valid for any num_classes (block last dim == array dim).
        TC = num_classes
        grid_c = 1
        TB = max(8, (MAX_BLOCK_BYTES // (lane_w * elem)) // 8 * 8)
        TB = min(TB, _round_up(B, 8))
        # Keep >= 2 batch blocks (when B allows) so both v7x TensorCores get a
        # 'parallel' block to stream; costs nothing on single-TC chips.
        if _round_up(B, 8) >= 16 and _cdiv(B, TB) < 2:
            TB = min(TB, _round_up(_cdiv(_round_up(B, 8), 2), 8))
    else:
        # Gigantic class counts only: split the class axis into lane-dense
        # 128-multiple tiles (cdiv grid handles a non-multiple num_classes).
        TB = 8
        TC = max(128, (MAX_BLOCK_BYTES // (8 * elem)) // 128 * 128)
        grid_c = _cdiv(num_classes, TC)

    grid = (_cdiv(B, TB), grid_c)

    # ---------------- operands ----------------
    c2d = c.astype(jnp.int32).reshape(B, 1)
    seed_arr = jnp.asarray([seed], dtype=jnp.int32)

    # ---------------- trace-time specialization of the mask path ----------------
    if (mask is False) or (float(prob) >= 1.0):
        kernel = _plain_kernel
    else:
        threshold31 = max(0, min(int(round(float(prob) * (1 << 31))), (1 << 31) - 1))
        kernel = functools.partial(
            _masked_kernel, threshold31=threshold31, batch_tile=TB
        )

    cost = pl.CostEstimate(
        flops=0,
        transcendentals=0,
        bytes_accessed=B * num_classes * elem + B * 4 + 4,
    )

    out = pl.pallas_call(
        kernel,
        out_shape=jax.ShapeDtypeStruct((B, num_classes), out_dtype),
        grid_spec=pltpu.PrefetchScalarGridSpec(
            num_scalar_prefetch=1,                               # seed -> SMEM
            grid=grid,
            in_specs=[pl.BlockSpec((TB, 1), lambda i, j, seed: (i, 0))],
            out_specs=pl.BlockSpec((TB, TC), lambda i, j, seed: (i, j)),
        ),
        compiler_params=pltpu.CompilerParams(
            dimension_semantics=("parallel", "parallel")
        ),
        cost_estimate=cost,
    )(seed_arr, c2d)

    return out


if __name__ == "__main__":
    num_classes = 16
    batch = 8
    prob = 0.9

    key = jax.random.PRNGKey(0)
    c = jax.random.randint(key, (batch,), 0, num_classes, dtype=jnp.int32)

    # masked path (bernoulli mask applied)
    out_masked = class_embedding_block(c, num_classes, prob=prob, mask=True, seed=0)
    out_masked = jax.block_until_ready(out_masked)

    # unmasked path (mask=False -> plain one-hot, float32)
    out_plain = class_embedding_block(c, num_classes, prob=prob, mask=False, seed=0)
    out_plain = jax.block_until_ready(out_plain)

    onehot_ref = jax.nn.one_hot(c, num_classes, dtype=jnp.float32)
    assert out_plain.shape == (batch, num_classes)
    assert out_plain.dtype == jnp.float32
    assert jnp.allclose(out_plain, onehot_ref)
    # masked output can only be 0 or the one-hot value, and 0 off the hot lane
    assert jnp.all((out_masked == 0.0) | (out_masked == onehot_ref))
    assert jnp.all(out_masked[onehot_ref == 0.0] == 0.0)

    # larger case: multi-block batch grid (>=2 'parallel' blocks), full-row
    # tiles, B not a multiple of the batch tile (partial boundary block, no
    # post-call slice), plus a statistics check on the keep rate.
    batch2, classes2 = 1000, 384
    c2 = jax.random.randint(
        jax.random.PRNGKey(1), (batch2,), 0, classes2, dtype=jnp.int32
    )
    out2 = class_embedding_block(c2, classes2, prob=prob, mask=True, seed=7)
    out2 = jax.block_until_ready(out2)
    onehot2 = jax.nn.one_hot(c2, classes2, dtype=jnp.float32)
    assert out2.shape == (batch2, classes2)
    assert jnp.all((out2 == 0.0) | (out2 == onehot2))
    assert jnp.all(out2[onehot2 == 0.0] == 0.0)
    kept_frac = float(out2.sum()) / batch2
    assert 0.78 < kept_frac < 0.98, kept_frac      # ~Bernoulli(0.9) keep rate

    # awkward-shape case: num_classes not a multiple of 128 and B not a
    # multiple of 8 -> exercises unpadded output with partial blocks on both axes.
    batch3, classes3 = 100, 40
    c3 = jax.random.randint(
        jax.random.PRNGKey(2), (batch3,), 0, classes3, dtype=jnp.int32
    )
    out3_plain = class_embedding_block(c3, classes3, prob=prob, mask=False, seed=3)
    out3_masked = class_embedding_block(c3, classes3, prob=prob, mask=True, seed=3)
    out3_plain = jax.block_until_ready(out3_plain)
    out3_masked = jax.block_until_ready(out3_masked)
    onehot3 = jax.nn.one_hot(c3, classes3, dtype=jnp.float32)
    assert out3_plain.shape == (batch3, classes3)
    assert jnp.allclose(out3_plain, onehot3)
    assert jnp.all((out3_masked == 0.0) | (out3_masked == onehot3))
    assert jnp.all(out3_masked[onehot3 == 0.0] == 0.0)

    print("KERNEL_OK")
</pallas_src>

<mosaic_0001>
module attributes {stable_mosaic.version = 11 : i64} {
  func.func @_masked_kernel(%arg0: i32, %arg1: i32, %arg2: memref<1xi32, #tpu.memory_space<smem>>, %arg3: memref<8x1xi32, #tpu.memory_space<vmem>>, %arg4: memref<8x16xf32, #tpu.memory_space<vmem>>) attributes {dimension_semantics = [#tpu.dimension_semantics<parallel>, #tpu.dimension_semantics<parallel>], iteration_bounds = array<i64: 1, 1>, scalar_prefetch = 1 : i64, scratch_operands = 0 : i64, tpu.core_type = #tpu.core_type<tc>, window_params = [{transform_indices = @transform_0, window_bounds = array<i64: 8, 1>}, {transform_indices = @transform_1, window_bounds = array<i64: 8, 16>}]} {
    %0 = tpu.iota {dimensions = array<i32: 1>} : vector<8x16xi32>
    %c16_i32 = arith.constant 16 : i32
    %1 = arith.muli %arg1, %c16_i32 : i32
    %2 = vector.broadcast %1 : i32 to vector<8x16xi32>
    %3 = arith.addi %0, %2 : vector<8x16xi32>
    %c0 = arith.constant 0 : index
    %c0_0 = arith.constant 0 : index
    %4 = vector.load %arg3[%c0, %c0_0] : memref<8x1xi32, #tpu.memory_space<vmem>>, vector<8x1xi32>
    %5 = vector.broadcast %4 : vector<8x1xi32> to vector<8x16xi32>
    %6 = arith.cmpi eq, %3, %5 : vector<8x16xi32>
    %7 = arith.extui %6 : vector<8x16xi1> to vector<8x16xi32>
    %8 = arith.sitofp %7 : vector<8x16xi32> to vector<8x16xf32>
    %9 = tpu.iota {dimensions = array<i32: 0>} : vector<8x1xi32>
    %c8_i32 = arith.constant 8 : i32
    %10 = arith.muli %arg0, %c8_i32 : i32
    %11 = vector.broadcast %10 : i32 to vector<8x1xi32>
    %12 = arith.addi %9, %11 : vector<8x1xi32>
    %c0_1 = arith.constant 0 : index
    %13 = memref.load %arg2[%c0_1] : memref<1xi32, #tpu.memory_space<smem>>
    %c1_i32 = arith.constant 1 : i32
    %14 = arith.addi %13, %c1_i32 : i32
    %c-1640531527_i32 = arith.constant -1640531527 : i32
    %15 = arith.muli %14, %c-1640531527_i32 : i32
    %c16_i32_2 = arith.constant 16 : i32
    %16 = arith.shrui %15, %c16_i32_2 : i32
    %17 = arith.xori %15, %16 : i32
    %c2146121005_i32 = arith.constant 2146121005 : i32
    %18 = arith.muli %17, %c2146121005_i32 : i32
    %c15_i32 = arith.constant 15 : i32
    %19 = arith.shrui %18, %c15_i32 : i32
    %20 = arith.xori %18, %19 : i32
    %c-2073254261_i32 = arith.constant -2073254261 : i32
    %21 = arith.muli %20, %c-2073254261_i32 : i32
    %c16_i32_3 = arith.constant 16 : i32
    %22 = arith.shrui %21, %c16_i32_3 : i32
    %23 = arith.xori %21, %22 : i32
    %c16_i32_4 = arith.constant 16 : i32
    %24 = vector.broadcast %c16_i32_4 : i32 to vector<8x1xi32>
    %25 = arith.shrui %12, %24 : vector<8x1xi32>
    %26 = arith.xori %12, %25 : vector<8x1xi32>
    %c2146121005_i32_5 = arith.constant 2146121005 : i32
    %27 = vector.broadcast %c2146121005_i32_5 : i32 to vector<8x1xi32>
    %28 = arith.muli %26, %27 : vector<8x1xi32>
    %c15_i32_6 = arith.constant 15 : i32
    %29 = vector.broadcast %c15_i32_6 : i32 to vector<8x1xi32>
    %30 = arith.shrui %28, %29 : vector<8x1xi32>
    %31 = arith.xori %28, %30 : vector<8x1xi32>
    %c-2073254261_i32_7 = arith.constant -2073254261 : i32
    %32 = vector.broadcast %c-2073254261_i32_7 : i32 to vector<8x1xi32>
    %33 = arith.muli %31, %32 : vector<8x1xi32>
    %c16_i32_8 = arith.constant 16 : i32
    %34 = vector.broadcast %c16_i32_8 : i32 to vector<8x1xi32>
    %35 = arith.shrui %33, %34 : vector<8x1xi32>
    %36 = arith.xori %33, %35 : vector<8x1xi32>
    %37 = vector.broadcast %23 : i32 to vector<8x1xi32>
    %38 = arith.xori %36, %37 : vector<8x1xi32>
    %c16_i32_9 = arith.constant 16 : i32
    %39 = vector.broadcast %c16_i32_9 : i32 to vector<8x1xi32>
    %40 = arith.shrui %38, %39 : vector<8x1xi32>
    %41 = arith.xori %38, %40 : vector<8x1xi32>
    %c2146121005_i32_10 = arith.constant 2146121005 : i32
    %42 = vector.broadcast %c2146121005_i32_10 : i32 to vector<8x1xi32>
    %43 = arith.muli %41, %42 : vector<8x1xi32>
    %c15_i32_11 = arith.constant 15 : i32
    %44 = vector.broadcast %c15_i32_11 : i32 to vector<8x1xi32>
    %45 = arith.shrui %43, %44 : vector<8x1xi32>
    %46 = arith.xori %43, %45 : vector<8x1xi32>
    %c-2073254261_i32_12 = arith.constant -2073254261 : i32
    %47 = vector.broadcast %c-2073254261_i32_12 : i32 to vector<8x1xi32>
    %48 = arith.muli %46, %47 : vector<8x1xi32>
    %c16_i32_13 = arith.constant 16 : i32
    %49 = vector.broadcast %c16_i32_13 : i32 to vector<8x1xi32>
    %50 = arith.shrui %48, %49 : vector<8x1xi32>
    %51 = arith.xori %48, %50 : vector<8x1xi32>
    %c1_i32_14 = arith.constant 1 : i32
    %52 = vector.broadcast %c1_i32_14 : i32 to vector<8x1xi32>
    %53 = arith.shrui %51, %52 : vector<8x1xi32>
    %c1932735283_i32 = arith.constant 1932735283 : i32
    %54 = vector.broadcast %c1932735283_i32 : i32 to vector<8x1xi32>
    %55 = arith.cmpi slt, %53, %54 : vector<8x1xi32>
    %56 = arith.extui %55 : vector<8x1xi1> to vector<8x1xi32>
    %57 = arith.sitofp %56 : vector<8x1xi32> to vector<8x1xf32>
    %58 = vector.broadcast %57 : vector<8x1xf32> to vector<8x16xf32>
    %59 = arith.mulf %8, %58 : vector<8x16xf32>
    %c0_15 = arith.constant 0 : index
    %c0_16 = arith.constant 0 : index
    %60 = vector.load %arg4[%c0_15, %c0_16] : memref<8x16xf32, #tpu.memory_space<vmem>>, vector<8x16xf32>
    tpu.vector_store %arg4[%c0_15, %c0_16], %59 {strides = array<i32>} : memref<8x16xf32, #tpu.memory_space<vmem>>, vector<8x16xf32>,
    return
  }
  func.func @transform_0(%arg0: i32, %arg1: i32, %arg2: memref<1xi32, #tpu.memory_space<smem>>) -> (i32, i32) {
    %c0_i32 = arith.constant 0 : i32
    %c0_i32_0 = arith.constant 0 : i32
    return %arg0, %c0_i32 : i32, i32
  }
  func.func @transform_1(%arg0: i32, %arg1: i32, %arg2: memref<1xi32, #tpu.memory_space<smem>>) -> (i32, i32) {
    %c0_i32 = arith.constant 0 : i32
    return %arg0, %arg1 : i32, i32
  }
}

</mosaic_0001>

<llo_original>
// kernel: tpu_custom_call.1
$region0: #{tpu_custom_call.1}
  #allocation0 [shape = 'u32[]', space=smem, size = 0x4, offset = 0x4, fixed_abs, tag = 'smem constant byte address 0x4 - core index']
  #allocation1 [shape = 'u32[144,128]{1,0:T(1,128)}', space=vmem, size = 0x12000, scoped, tag = 'internal scratch']
  #allocation2 [shape = 's32[1]{0}', space=sflag, size = 0x4, scoped, tag = 'scoped memory for tpu_custom_call.1']
  #allocation3 [shape = 's32[1]{0:T(128)S(6)}', space=smem, size = 0x200, scoped, tag = 'prefetched SMEM operand 0']
  %s0 = inlined_call_operand.<no memory space> [shape: s32[1], index: 0, kind: input, shape index: {}]
  %s1 = inlined_call_operand.vmem [shape: s32[8,1], index: 1, kind: input, shape index: {}]
  %s2 = inlined_call_operand.hbm [shape: f32[8,16], index: 2, kind: output, shape index: {}]
  %s3 = sld [smem:[#allocation0]]
  $region14: #{tpu_custom_call.1} parent=0
    _
  %s5 = ssub.s32 1, %s3
  %s6 = scalar_select 0, %s5, %s3
  %7 = sst [smem:[#allocation3]] %s0
  $region1: #{tpu_custom_call.1} parent=0
    #allocation4 [shape = 'u8[4096]{0}', space=vmem, size = 0x1000, scoped, tag = 'output window, operand 0, single buffered']
    #allocation5 [shape = 's32[1]{0}', space=sflag, size = 0x4, scoped, tag = 'scoped memory for tpu_custom_call.1']
    %8 = vsyncpa [#allocation5], 0
    // Predicated region
    $region2: #{tpu_custom_call.1} parent=1 // pred_check
      _
    $region3: #{tpu_custom_call.1} parent=1 // pred_check_branch
      %10 = sbr.rel (0) target = $region5
    $region4: #{tpu_custom_call.1} parent=1 // pred_region
      _
    $region5: #{tpu_custom_call.1} parent=1 // pred_fallthru
      _
    %v11 = vlaneseq
    %v12 = vand.u32 %v11, 127
    %s13 = smul.u32 0, 16
    %v14 = vstv %s13
    %v15 = vadd.s32 %v12, %v14
    %v16 = vld [vmem:[%s1] sm:$0xff]
    %17 = vset.pattern.permute.xlu0 0
    %18 = vperm.xlu0 %17, %v16
    %v19 = vpop.permute.xlu0 %18
    %vm20 = vcmp.eq.s32.totalorder %v15, %v19
    %v21 = vsel %vm20, 1, 0
    %v22 = vcvt.s32.f32 %v21
    %v23 = vlaneseq
    %v24 = vshrl.u32 %v23, 7
    %s25 = smul.u32 0, 8
    %v26 = vstv %s25
    %v27 = vadd.s32 %v24, %v26
    %s28 = sld [smem:[#allocation3]]
    %s29 = sadd.s32 %s28, 1
    %s30 = smul.u32 %s29, 2654435769
    %s31 = sshrl.u32 %s30, 16
    %s32 = sxor.u32 %s30, %s31
    %s33 = smul.u32 %s32, 2146121005
    %s34 = sshrl.u32 %s33, 15
    %s35 = sxor.u32 %s33, %s34
    %s36 = smul.u32 %s35, 2221713035
    %s37 = sshrl.u32 %s36, 16
    %s38 = sxor.u32 %s36, %s37
    %v39 = vshrl.u32 %v27, 16
    %v40 = vxor.u32 %v27, %v39
    %v41 = vmul.u32 %v40, 2146121005
    %v42 = vshrl.u32 %v41, 15
    %v43 = vxor.u32 %v41, %v42
    %v44 = vmul.u32 %v43, 2221713035
    %v45 = vshrl.u32 %v44, 16
    %v46 = vxor.u32 %v44, %v45
    %v47 = vstv %s38
    %v48 = vxor.u32 %v46, %v47
    %v49 = vshrl.u32 %v48, 16
    %v50 = vxor.u32 %v48, %v49
    %v51 = vmul.u32 %v50, 2146121005
    %v52 = vshrl.u32 %v51, 15
    %v53 = vxor.u32 %v51, %v52
    %v54 = vmul.u32 %v53, 2221713035
    %v55 = vshrl.u32 %v54, 16
    %v56 = vxor.u32 %v54, %v55
    %v57 = vshrl.u32 %v56, 1
    %vm58 = vcmp.lt.s32.totalorder %v57, 1932735283
    %v59 = vsel %vm58, 1, 0
    %v60 = vcvt.s32.f32 %v59
    %v61 = vmul.f32 %v22, %v60
    %vm62 = vcmask 130048
    %63 = vst.msk [vmem:[#allocation4] sm:$0xff] %vm62, %v61
    // Predicated region
    $region6: #{tpu_custom_call.1} parent=1 // pred_check
      _
    $region7: #{tpu_custom_call.1} parent=1 // pred_check_branch
      %65 = sbr.rel (0) target = $region9
    $region8: #{tpu_custom_call.1} parent=1 // pred_region
      %s67 = ssub.s32 128, 128
      %68 = vsyncadd [#allocation5], %s67
      %s70 = sshll.u32 [#allocation4], 4
      %s71 = int_to_ptr.vmem [resolvable:$true] %s70
      %73 = dma.vmem_to_hbm [thread:$0]  %s71, 128, %s2, [#allocation5]
    $region9: #{tpu_custom_call.1} parent=1 // pred_fallthru
      _
    // Predicated region
    $region10: #{tpu_custom_call.1} parent=1 // pred_check
      _
    $region11: #{tpu_custom_call.1} parent=1 // pred_check_branch
      %75 = sbr.rel (0) target = $region13
    $region12: #{tpu_custom_call.1} parent=1 // pred_region
      %76 = dma.done [#allocation5], 128
    $region13: #{tpu_custom_call.1} parent=1 // pred_fallthru
      _
    %77 = vsyncpa [#allocation5], 1

</llo_original>
